<compile_context>
chip_gen: v5e
topology: v5e:2x2
jax: 0.10.0
libtpu: 0.0.40
codegen_flags: <defaults>
</compile_context>

<pallas_src>
import functools

import jax
import jax.numpy as jnp
from jax.experimental import pallas as pl
from jax.experimental.pallas import tpu as pltpu


def _round_up(x, m):
    return ((x + m - 1) // m) * m


def _pick_tm(m):
    """Row-tile choice: prefer a large exact divisor of M (no padding, no
    post-kernel slice); fall back to one padded tile for small ragged M."""
    for cand in (1024, 512, 256, 128, 64, 32, 16):
        if m % cand == 0:
            return cand
    return _round_up(m, 16) if m <= 1024 else 256


# ----------------------------------------------------------------------------
# Fused patch-matmul kernel:  out = (A @ W) + bias
#   A  : (tm, K)  bf16   flattened patches (K already 128-aligned in init)
#   W  : (K,  E)  bf16   conv weight, fully VMEM-resident (constant index_map)
#   b  : (1,  E)  f32    VMEM-resident bias
#   out: (tm, E)  f32 (or bf16)   f32 MXU accumulate + f32 bias epilogue
# ----------------------------------------------------------------------------
def _patch_matmul_kernel(a_ref, w_ref, b_ref, o_ref):
    acc = jnp.dot(a_ref[...], w_ref[...], preferred_element_type=jnp.float32)
    o_ref[...] = (acc + b_ref[...]).astype(o_ref.dtype)


def patch_matmul(a_bf16, w_bf16, b_f32, *, out_dtype=jnp.float32):
    """a:(M,K) bf16, w:(K,E) bf16, b:(1,E) f32 -> (M,E) out_dtype."""
    m, k = a_bf16.shape
    kw, e = w_bf16.shape
    assert k == kw and b_f32.shape == (1, e)

    tm = _pick_tm(m)
    mp = _round_up(m, tm)
    if mp != m:                                   # rare: ragged M only
        a_bf16 = jnp.pad(a_bf16, ((0, mp - m), (0, 0)))

    out = pl.pallas_call(
        _patch_matmul_kernel,
        grid=(mp // tm,),                          # 1-D grid over rows only
        in_specs=[
            pl.BlockSpec((tm, k), lambda i: (i, 0)),
            pl.BlockSpec((k, e), lambda i: (0, 0)),   # weight VMEM-resident
            pl.BlockSpec((1, e), lambda i: (0, 0)),   # bias   VMEM-resident
        ],
        out_specs=pl.BlockSpec((tm, e), lambda i: (i, 0)),
        out_shape=jax.ShapeDtypeStruct((mp, e), out_dtype),
        compiler_params=pltpu.CompilerParams(
            dimension_semantics=("parallel",)),    # shard M across TCs (v7x)
    )(a_bf16, w_bf16, b_f32)
    return out if mp == m else out[:m]


# ----------------------------------------------------------------------------
# Patch extraction (pure layout change) — cast to bf16 BEFORE the transpose.
# ----------------------------------------------------------------------------
def extract_patches_bf16(x_nchw, patch):
    """(N,C,H,W) -> (N*num_patches, C*P*P) bf16; K flattened in (c,ph,pw) order
    to match torch conv.weight.reshape(E, -1)."""
    n, c, h, w = x_nchw.shape
    assert h % patch == 0 and w % patch == 0, "H, W must be multiples of patch_size"
    gh, gw = h // patch, w // patch
    x = x_nchw.astype(jnp.bfloat16)                    # halve transpose traffic
    x = x.reshape(n, c, gh, patch, gw, patch)
    x = jnp.transpose(x, (0, 2, 4, 1, 3, 5))           # (n, gh, gw, c, ph, pw)
    return x.reshape(n * gh * gw, c * patch * patch), (n, gh * gw)


# ----------------------------------------------------------------------------
# Forward (patch_size / embed_dim are STATIC — this was the compile bug)
# ----------------------------------------------------------------------------
@functools.partial(jax.jit, static_argnames=("patch_size", "embed_dim"))
def patch_embed_forward(x_nchw, w_ke, b_1e, *, patch_size, embed_dim):
    a, (n, num_patches) = extract_patches_bf16(x_nchw, patch_size)
    kp = w_ke.shape[0]
    if kp != a.shape[1]:                               # only if K not 128-aligned
        a = jnp.pad(a, ((0, 0), (0, kp - a.shape[1])))
    out = patch_matmul(a, w_ke, b_1e)                  # (M, Ep) f32
    if out.shape[1] != embed_dim:                      # only if E not 128-aligned
        out = out[:, :embed_dim]
    # torch's Flatten(2) + transpose(1,2) is folded into this (no-op-cheap) reshape:
    return out.reshape(n, num_patches, embed_dim)      # (N, num_patches, E)


# ----------------------------------------------------------------------------
# Deterministic synthetic parameters + one-time (hoisted) kernel-side prep
# ----------------------------------------------------------------------------
def init_params(key, in_channels=3, patch_size=16, embed_dim=256):
    k1, k2 = jax.random.split(key)
    fan_in = in_channels * patch_size * patch_size
    w4d = jax.random.normal(k1, (embed_dim, in_channels, patch_size, patch_size),
                            jnp.float32) * (1.0 / fan_in) ** 0.5
    bias = 0.01 * jax.random.normal(k2, (embed_dim,), jnp.float32)

    # Hoisted prep (done once, never per forward call):
    kp = _round_up(fan_in, 128)
    ep = _round_up(embed_dim, 128)
    w2d = w4d.reshape(embed_dim, -1).T                             # (K, E) f32
    w2d = jnp.pad(w2d, ((0, kp - fan_in), (0, ep - embed_dim)))
    b1e = jnp.pad(bias, (0, ep - embed_dim)).reshape(1, ep).astype(jnp.float32)
    return dict(
        w4d=w4d, bias=bias,                     # torch-layout originals (for ref)
        w_ke=w2d.astype(jnp.bfloat16),          # (Kp, Ep) bf16, MXU-ready
        b_1e=b1e,                               # (1,  Ep) f32
    )


if __name__ == "__main__":
    key = jax.random.PRNGKey(0)
    pkey, xkey = jax.random.split(key)

    # Small shapes consistent with the module (defaults P=16, C=3; img 224->64
    # and embed_dim 768->256 shrunk for the demo).
    batch, in_channels, img_size, patch_size, embed_dim = 2, 3, 64, 16, 256
    params = init_params(pkey, in_channels=in_channels,
                         patch_size=patch_size, embed_dim=embed_dim)
    x = jax.random.normal(xkey, (batch, in_channels, img_size, img_size),
                          jnp.float32)

    out = patch_embed_forward(x, params['w_ke'], params['b_1e'],
                              patch_size=patch_size, embed_dim=embed_dim)
    out = jax.block_until_ready(out)

    num_patches = (img_size // patch_size) ** 2
    assert out.shape == (batch, num_patches, embed_dim), out.shape
    assert bool(jnp.all(jnp.isfinite(out)))

    # f32 XLA reference (loose tolerance: kernel uses bf16 MXU operands with
    # f32 accumulation; the PyTorch Conv2d is pure f32).
    ref = jax.lax.conv_general_dilated(
        x, params['w4d'], window_strides=(patch_size, patch_size),
        padding='VALID', dimension_numbers=('NCHW', 'OIHW', 'NCHW'))
    ref = ref.reshape(batch, embed_dim, -1).transpose(0, 2, 1) + params['bias']
    assert bool(jnp.allclose(out, ref, atol=1e-1, rtol=1e-1)), \
        float(jnp.max(jnp.abs(out - ref)))

    print("KERNEL_OK")
</pallas_src>

<mosaic_0001>
module attributes {stable_mosaic.version = 11 : i64} {
  func.func @_patch_matmul_kernel(%arg0: i32, %arg1: memref<32x768xbf16, #tpu.memory_space<vmem>>, %arg2: memref<768x256xbf16, #tpu.memory_space<vmem>>, %arg3: memref<1x256xf32, #tpu.memory_space<vmem>>, %arg4: memref<32x256xf32, #tpu.memory_space<vmem>>) attributes {dimension_semantics = [#tpu.dimension_semantics<parallel>], iteration_bounds = array<i64: 1>, scalar_prefetch = 0 : i64, scratch_operands = 0 : i64, tpu.core_type = #tpu.core_type<tc>, window_params = [{transform_indices = @transform_0, window_bounds = array<i64: 32, 768>}, {pipeline_mode = #tpu.pipeline_mode<synchronous>, transform_indices = @transform_1, window_bounds = array<i64: 768, 256>}, {pipeline_mode = #tpu.pipeline_mode<synchronous>, transform_indices = @transform_2, window_bounds = array<i64: 1, 256>}, {transform_indices = @transform_3, window_bounds = array<i64: 32, 256>}]} {
    %c0 = arith.constant 0 : index
    %c0_0 = arith.constant 0 : index
    %0 = vector.load %arg1[%c0, %c0_0] : memref<32x768xbf16, #tpu.memory_space<vmem>>, vector<32x768xbf16>
    %c0_1 = arith.constant 0 : index
    %c0_2 = arith.constant 0 : index
    %1 = vector.load %arg2[%c0_1, %c0_2] : memref<768x256xbf16, #tpu.memory_space<vmem>>, vector<768x256xbf16>
    %cst = arith.constant dense<0.000000e+00> : vector<32x256xf32>
    %2 = tpu.matmul %0, %1, %cst {dimension_numbers = #tpu.dot_dimension_numbers<[1], [0], [0], [1], [0, 0, 1, 1], [], []>} : vector<32x768xbf16>, vector<768x256xbf16>, vector<32x256xf32> -> vector<32x256xf32>
    %c0_3 = arith.constant 0 : index
    %c0_4 = arith.constant 0 : index
    %3 = vector.load %arg3[%c0_3, %c0_4] : memref<1x256xf32, #tpu.memory_space<vmem>>, vector<1x256xf32>
    %4 = vector.broadcast %3 : vector<1x256xf32> to vector<32x256xf32>
    %5 = arith.addf %2, %4 : vector<32x256xf32>
    %c0_5 = arith.constant 0 : index
    %c0_6 = arith.constant 0 : index
    %6 = vector.load %arg4[%c0_5, %c0_6] : memref<32x256xf32, #tpu.memory_space<vmem>>, vector<32x256xf32>
    tpu.vector_store %arg4[%c0_5, %c0_6], %5 {strides = array<i32>} : memref<32x256xf32, #tpu.memory_space<vmem>>, vector<32x256xf32>,
    return
  }
  func.func @transform_0(%arg0: i32) -> (i32, i32) {
    %c0_i32 = arith.constant 0 : i32
    %c0_i32_0 = arith.constant 0 : i32
    return %arg0, %c0_i32 : i32, i32
  }
  func.func @transform_1(%arg0: i32) -> (i32, i32) {
    %c0_i32 = arith.constant 0 : i32
    %c0_i32_0 = arith.constant 0 : i32
    %c0_i32_1 = arith.constant 0 : i32
    return %c0_i32, %c0_i32_0 : i32, i32
  }
  func.func @transform_2(%arg0: i32) -> (i32, i32) {
    %c0_i32 = arith.constant 0 : i32
    %c0_i32_0 = arith.constant 0 : i32
    %c0_i32_1 = arith.constant 0 : i32
    return %c0_i32, %c0_i32_0 : i32, i32
  }
  func.func @transform_3(%arg0: i32) -> (i32, i32) {
    %c0_i32 = arith.constant 0 : i32
    %c0_i32_0 = arith.constant 0 : i32
    return %arg0, %c0_i32 : i32, i32
  }
}

</mosaic_0001>

<llo_original>
// kernel: patch_embed_forward.1
$region0: #{patch_embed_forward.1}
  #allocation0 [shape = 'u32[]', space=smem, size = 0x4, offset = 0x4, fixed_abs, tag = 'smem constant byte address 0x4 - core index']
  #allocation1 [shape = 'u32[72,128]{1,0:T(1,128)}', space=vmem, size = 0x9000, scoped, tag = 'internal scratch']
  %s0 = inlined_call_operand.vmem [shape: bf16[32,768], index: 0, kind: input, shape index: {}]
  %s1 = inlined_call_operand.vmem [shape: bf16[768,256], index: 1, kind: input, shape index: {}]
  %s2 = inlined_call_operand.vmem [shape: f32[1,256], index: 2, kind: input, shape index: {}]
  %s3 = inlined_call_operand.hbm [shape: f32[32,256], index: 3, kind: output, shape index: {}]
  %s4 = sld [smem:[#allocation0]]
  $region22: #{patch_embed_forward.1} parent=0
    _
  %s6 = ssub.s32 1, %s4
  %s7 = scalar_select 0, %s6, %s4
  $region1: #{patch_embed_forward.1} parent=0
    #allocation2 [shape = 'u8[32768]{0}', space=vmem, size = 0x8000, scoped, tag = 'output window, operand 0, single buffered']
    #allocation3 [shape = 's32[1]{0}', space=sflag, size = 0x4, scoped, tag = 'scoped memory for patch_embed_forward.1']
    %8 = vsyncpa [#allocation3], 0
    // Predicated region
    $region2: #{patch_embed_forward.1} parent=1 // pred_check
      _
    $region3: #{patch_embed_forward.1} parent=1 // pred_check_branch
      %10 = sbr.rel (0) target = $region5
    $region4: #{patch_embed_forward.1} parent=1 // pred_region
      _
    $region5: #{patch_embed_forward.1} parent=1 // pred_fallthru
      _
    // Predicated region
    $region6: #{patch_embed_forward.1} parent=1 // pred_check
      _
    $region7: #{patch_embed_forward.1} parent=1 // pred_check_branch
      %12 = sbr.rel (0) target = $region9
    $region8: #{patch_embed_forward.1} parent=1 // pred_region
      _
    $region9: #{patch_embed_forward.1} parent=1 // pred_fallthru
      _
    // Predicated region
    $region10: #{patch_embed_forward.1} parent=1 // pred_check
      _
    $region11: #{patch_embed_forward.1} parent=1 // pred_check_branch
      %14 = sbr.rel (0) target = $region13
    $region12: #{patch_embed_forward.1} parent=1 // pred_region
      _
    $region13: #{patch_embed_forward.1} parent=1 // pred_fallthru
      _
    %v15 = vld [vmem:[%s0] sm:$0xff]
    %v16 = vld [vmem:[%s0 + $0x8] sm:$0xff]
    %v17 = vld [vmem:[%s0 + $0x10] sm:$0xff]
    %v18 = vld [vmem:[%s0 + $0x18] sm:$0xff]
    %v19 = vld [vmem:[%s0 + $0x20] sm:$0xff]
    %v20 = vld [vmem:[%s0 + $0x28] sm:$0xff]
    %v21 = vld [vmem:[%s0 + $0x30] sm:$0xff]
    %v22 = vld [vmem:[%s0 + $0x38] sm:$0xff]
    %v23 = vld [vmem:[%s0 + $0x40] sm:$0xff]
    %v24 = vld [vmem:[%s0 + $0x48] sm:$0xff]
    %v25 = vld [vmem:[%s0 + $0x50] sm:$0xff]
    %v26 = vld [vmem:[%s0 + $0x58] sm:$0xff]
    %v27 = vld [vmem:[%s1] sm:$0xff]
    %v28 = vld [vmem:[%s1 + $0x8] sm:$0xff]
    %v29 = vld [vmem:[%s1 + $0x10] sm:$0xff]
    %v30 = vld [vmem:[%s1 + $0x18] sm:$0xff]
    %v31 = vld [vmem:[%s1 + $0x20] sm:$0xff]
    %v32 = vld [vmem:[%s1 + $0x28] sm:$0xff]
    %v33 = vld [vmem:[%s1 + $0x30] sm:$0xff]
    %v34 = vld [vmem:[%s1 + $0x38] sm:$0xff]
    %v35 = vld [vmem:[%s1 + $0x40] sm:$0xff]
    %v36 = vld [vmem:[%s1 + $0x48] sm:$0xff]
    %v37 = vld [vmem:[%s1 + $0x50] sm:$0xff]
    %v38 = vld [vmem:[%s1 + $0x58] sm:$0xff]
    %v39 = vld [vmem:[%s1 + $0x60] sm:$0xff]
    %v40 = vld [vmem:[%s1 + $0x68] sm:$0xff]
    %v41 = vld [vmem:[%s1 + $0x70] sm:$0xff]
    %v42 = vld [vmem:[%s1 + $0x78] sm:$0xff]
    %v43 = vld [vmem:[%s1 + $0x80] sm:$0xff]
    %v44 = vld [vmem:[%s1 + $0x88] sm:$0xff]
    %v45 = vld [vmem:[%s1 + $0x90] sm:$0xff]
    %v46 = vld [vmem:[%s1 + $0x98] sm:$0xff]
    %v47 = vld [vmem:[%s1 + $0xa0] sm:$0xff]
    %v48 = vld [vmem:[%s1 + $0xa8] sm:$0xff]
    %v49 = vld [vmem:[%s1 + $0xb0] sm:$0xff]
    %v50 = vld [vmem:[%s1 + $0xb8] sm:$0xff]
    %v51 = vld [vmem:[%s1 + $0xc0] sm:$0xff]
    %v52 = vld [vmem:[%s1 + $0xc8] sm:$0xff]
    %v53 = vld [vmem:[%s1 + $0xd0] sm:$0xff]
    %v54 = vld [vmem:[%s1 + $0xd8] sm:$0xff]
    %v55 = vld [vmem:[%s1 + $0xe0] sm:$0xff]
    %v56 = vld [vmem:[%s1 + $0xe8] sm:$0xff]
    %v57 = vld [vmem:[%s1 + $0xf0] sm:$0xff]
    %v58 = vld [vmem:[%s1 + $0xf8] sm:$0xff]
    %v59 = vld [vmem:[%s1 + $0x100] sm:$0xff]
    %v60 = vld [vmem:[%s1 + $0x108] sm:$0xff]
    %v61 = vld [vmem:[%s1 + $0x110] sm:$0xff]
    %v62 = vld [vmem:[%s1 + $0x118] sm:$0xff]
    %v63 = vld [vmem:[%s1 + $0x120] sm:$0xff]
    %v64 = vld [vmem:[%s1 + $0x128] sm:$0xff]
    %v65 = vld [vmem:[%s1 + $0x130] sm:$0xff]
    %v66 = vld [vmem:[%s1 + $0x138] sm:$0xff]
    %v67 = vld [vmem:[%s1 + $0x140] sm:$0xff]
    %v68 = vld [vmem:[%s1 + $0x148] sm:$0xff]
    %v69 = vld [vmem:[%s1 + $0x150] sm:$0xff]
    %v70 = vld [vmem:[%s1 + $0x158] sm:$0xff]
    %v71 = vld [vmem:[%s1 + $0x160] sm:$0xff]
    %v72 = vld [vmem:[%s1 + $0x168] sm:$0xff]
    %v73 = vld [vmem:[%s1 + $0x170] sm:$0xff]
    %v74 = vld [vmem:[%s1 + $0x178] sm:$0xff]
    %v75 = vld [vmem:[%s1 + $0x180] sm:$0xff]
    %v76 = vld [vmem:[%s1 + $0x188] sm:$0xff]
    %v77 = vld [vmem:[%s1 + $0x190] sm:$0xff]
    %v78 = vld [vmem:[%s1 + $0x198] sm:$0xff]
    %v79 = vld [vmem:[%s1 + $0x1a0] sm:$0xff]
    %v80 = vld [vmem:[%s1 + $0x1a8] sm:$0xff]
    %v81 = vld [vmem:[%s1 + $0x1b0] sm:$0xff]
    %v82 = vld [vmem:[%s1 + $0x1b8] sm:$0xff]
    %v83 = vld [vmem:[%s1 + $0x1c0] sm:$0xff]
    %v84 = vld [vmem:[%s1 + $0x1c8] sm:$0xff]
    %v85 = vld [vmem:[%s1 + $0x1d0] sm:$0xff]
    %v86 = vld [vmem:[%s1 + $0x1d8] sm:$0xff]
    %v87 = vld [vmem:[%s1 + $0x1e0] sm:$0xff]
    %v88 = vld [vmem:[%s1 + $0x1e8] sm:$0xff]
    %v89 = vld [vmem:[%s1 + $0x1f0] sm:$0xff]
    %v90 = vld [vmem:[%s1 + $0x1f8] sm:$0xff]
    %v91 = vld [vmem:[%s1 + $0x200] sm:$0xff]
    %v92 = vld [vmem:[%s1 + $0x208] sm:$0xff]
    %v93 = vld [vmem:[%s1 + $0x210] sm:$0xff]
    %v94 = vld [vmem:[%s1 + $0x218] sm:$0xff]
    %v95 = vld [vmem:[%s1 + $0x220] sm:$0xff]
    %v96 = vld [vmem:[%s1 + $0x228] sm:$0xff]
    %v97 = vld [vmem:[%s1 + $0x230] sm:$0xff]
    %v98 = vld [vmem:[%s1 + $0x238] sm:$0xff]
    %v99 = vld [vmem:[%s1 + $0x240] sm:$0xff]
    %v100 = vld [vmem:[%s1 + $0x248] sm:$0xff]
    %v101 = vld [vmem:[%s1 + $0x250] sm:$0xff]
    %v102 = vld [vmem:[%s1 + $0x258] sm:$0xff]
    %v103 = vld [vmem:[%s1 + $0x260] sm:$0xff]
    %v104 = vld [vmem:[%s1 + $0x268] sm:$0xff]
    %v105 = vld [vmem:[%s1 + $0x270] sm:$0xff]
    %v106 = vld [vmem:[%s1 + $0x278] sm:$0xff]
    %v107 = vld [vmem:[%s1 + $0x280] sm:$0xff]
    %v108 = vld [vmem:[%s1 + $0x288] sm:$0xff]
    %v109 = vld [vmem:[%s1 + $0x290] sm:$0xff]
    %v110 = vld [vmem:[%s1 + $0x298] sm:$0xff]
    %v111 = vld [vmem:[%s1 + $0x2a0] sm:$0xff]
    %v112 = vld [vmem:[%s1 + $0x2a8] sm:$0xff]
    %v113 = vld [vmem:[%s1 + $0x2b0] sm:$0xff]
    %v114 = vld [vmem:[%s1 + $0x2b8] sm:$0xff]
    %v115 = vld [vmem:[%s1 + $0x2c0] sm:$0xff]
    %v116 = vld [vmem:[%s1 + $0x2c8] sm:$0xff]
    %v117 = vld [vmem:[%s1 + $0x2d0] sm:$0xff]
    %v118 = vld [vmem:[%s1 + $0x2d8] sm:$0xff]
    %v119 = vld [vmem:[%s1 + $0x2e0] sm:$0xff]
    %v120 = vld [vmem:[%s1 + $0x2e8] sm:$0xff]
    %v121 = vld [vmem:[%s1 + $0x2f0] sm:$0xff]
    %v122 = vld [vmem:[%s1 + $0x2f8] sm:$0xff]
    %v123 = vld [vmem:[%s2] sm:$0x3]
    %v125 = vperm.slane %v123, 0
    %v126 = vperm.slane %v123, 1
    %v141 = vunpack.c.l.b16 %v15
    %v142 = vunpack.c.h.b16 %v15
    %v143 = vunpack.c.l.b16 %v16
    %v144 = vunpack.c.h.b16 %v16
    %v145 = vunpack.c.l.b16 %v17
    %v146 = vunpack.c.h.b16 %v17
    %v147 = vunpack.c.l.b16 %v18
    %v148 = vunpack.c.h.b16 %v18
    %v149 = vunpack.c.l.b16 %v19
    %v150 = vunpack.c.h.b16 %v19
    %v151 = vunpack.c.l.b16 %v20
    %v152 = vunpack.c.h.b16 %v20
    %v153 = vunpack.c.l.b16 %v21
    %v154 = vunpack.c.h.b16 %v21
    %v155 = vunpack.c.l.b16 %v22
    %v156 = vunpack.c.h.b16 %v22
    %v157 = vunpack.c.l.b16 %v23
    %v158 = vunpack.c.h.b16 %v23
    %v159 = vunpack.c.l.b16 %v24
    %v160 = vunpack.c.h.b16 %v24
    %v161 = vunpack.c.l.b16 %v25
    %v162 = vunpack.c.h.b16 %v25
    %v163 = vunpack.c.l.b16 %v26
    %v164 = vunpack.c.h.b16 %v26
    %v165 = vpack.c.b16 %v147, %v141
    %v166 = vpack.c.b16 %v148, %v142
    %v167 = vpack.c.b16 %v149, %v143
    %v168 = vpack.c.b16 %v150, %v144
    %v169 = vpack.c.b16 %v151, %v145
    %v170 = vpack.c.b16 %v152, %v146
    %v171 = vpack.c.b16 %v159, %v153
    %v172 = vpack.c.b16 %v160, %v154
    %v173 = vpack.c.b16 %v161, %v155
    %v174 = vpack.c.b16 %v162, %v156
    %v175 = vpack.c.b16 %v163, %v157
    %v176 = vpack.c.b16 %v164, %v158
    %v285 = vunpack.c.l.b16 %v27
    %v286 = vunpack.c.h.b16 %v27
    %v287 = vunpack.c.l.b16 %v28
    %v288 = vunpack.c.h.b16 %v28
    %v289 = vunpack.c.l.b16 %v29
    %v290 = vunpack.c.h.b16 %v29
    %v291 = vunpack.c.l.b16 %v30
    %v292 = vunpack.c.h.b16 %v30
    %v293 = vunpack.c.l.b16 %v31
    %v294 = vunpack.c.h.b16 %v31
    %v295 = vunpack.c.l.b16 %v32
    %v296 = vunpack.c.h.b16 %v32
    %v297 = vunpack.c.l.b16 %v33
    %v298 = vunpack.c.h.b16 %v33
    %v299 = vunpack.c.l.b16 %v34
    %v300 = vunpack.c.h.b16 %v34
    %v301 = vunpack.c.l.b16 %v35
    %v302 = vunpack.c.h.b16 %v35
    %v303 = vunpack.c.l.b16 %v36
    %v304 = vunpack.c.h.b16 %v36
    %v305 = vunpack.c.l.b16 %v37
    %v306 = vunpack.c.h.b16 %v37
    %v307 = vunpack.c.l.b16 %v38
    %v308 = vunpack.c.h.b16 %v38
    %v309 = vunpack.c.l.b16 %v39
    %v310 = vunpack.c.h.b16 %v39
    %v311 = vunpack.c.l.b16 %v40
    %v312 = vunpack.c.h.b16 %v40
    %v313 = vunpack.c.l.b16 %v41
    %v314 = vunpack.c.h.b16 %v41
    %v315 = vunpack.c.l.b16 %v42
    %v316 = vunpack.c.h.b16 %v42
    %v317 = vunpack.c.l.b16 %v43
    %v318 = vunpack.c.h.b16 %v43
    %v319 = vunpack.c.l.b16 %v44
    %v320 = vunpack.c.h.b16 %v44
    %v321 = vunpack.c.l.b16 %v45
    %v322 = vunpack.c.h.b16 %v45
    %v323 = vunpack.c.l.b16 %v46
    %v324 = vunpack.c.h.b16 %v46
    %v325 = vunpack.c.l.b16 %v47
    %v326 = vunpack.c.h.b16 %v47
    %v327 = vunpack.c.l.b16 %v48
    %v328 = vunpack.c.h.b16 %v48
    %v329 = vunpack.c.l.b16 %v49
    %v330 = vunpack.c.h.b16 %v49
    %v331 = vunpack.c.l.b16 %v50
    %v332 = vunpack.c.h.b16 %v50
    %v333 = vunpack.c.l.b16 %v51
    %v334 = vunpack.c.h.b16 %v51
    %v335 = vunpack.c.l.b16 %v52
    %v336 = vunpack.c.h.b16 %v52
    %v337 = vunpack.c.l.b16 %v53
    %v338 = vunpack.c.h.b16 %v53
    %v339 = vunpack.c.l.b16 %v54
    %v340 = vunpack.c.h.b16 %v54
    %v341 = vunpack.c.l.b16 %v55
    %v342 = vunpack.c.h.b16 %v55
    %v343 = vunpack.c.l.b16 %v56
    %v344 = vunpack.c.h.b16 %v56
    %v345 = vunpack.c.l.b16 %v57
    %v346 = vunpack.c.h.b16 %v57
    %v347 = vunpack.c.l.b16 %v58
    %v348 = vunpack.c.h.b16 %v58
    %v349 = vunpack.c.l.b16 %v59
    %v350 = vunpack.c.h.b16 %v59
    %v351 = vunpack.c.l.b16 %v60
    %v352 = vunpack.c.h.b16 %v60
    %v353 = vunpack.c.l.b16 %v61
    %v354 = vunpack.c.h.b16 %v61
    %v355 = vunpack.c.l.b16 %v62
    %v356 = vunpack.c.h.b16 %v62
    %v357 = vunpack.c.l.b16 %v63
    %v358 = vunpack.c.h.b16 %v63
    %v359 = vunpack.c.l.b16 %v64
    %v360 = vunpack.c.h.b16 %v64
    %v361 = vunpack.c.l.b16 %v65
    %v362 = vunpack.c.h.b16 %v65
    %v363 = vunpack.c.l.b16 %v66
    %v364 = vunpack.c.h.b16 %v66
    %v365 = vunpack.c.l.b16 %v67
    %v366 = vunpack.c.h.b16 %v67
    %v367 = vunpack.c.l.b16 %v68
    %v368 = vunpack.c.h.b16 %v68
    %v369 = vunpack.c.l.b16 %v69
    %v370 = vunpack.c.h.b16 %v69
    %v371 = vunpack.c.l.b16 %v70
    %v372 = vunpack.c.h.b16 %v70
    %v373 = vunpack.c.l.b16 %v71
    %v374 = vunpack.c.h.b16 %v71
    %v375 = vunpack.c.l.b16 %v72
    %v376 = vunpack.c.h.b16 %v72
    %v377 = vunpack.c.l.b16 %v73
    %v378 = vunpack.c.h.b16 %v73
    %v379 = vunpack.c.l.b16 %v74
    %v380 = vunpack.c.h.b16 %v74
    %v381 = vunpack.c.l.b16 %v75
    %v382 = vunpack.c.h.b16 %v75
    %v383 = vunpack.c.l.b16 %v76
    %v384 = vunpack.c.h.b16 %v76
    %v385 = vunpack.c.l.b16 %v77
    %v386 = vunpack.c.h.b16 %v77
    %v387 = vunpack.c.l.b16 %v78
    %v388 = vunpack.c.h.b16 %v78
    %v389 = vunpack.c.l.b16 %v79
    %v390 = vunpack.c.h.b16 %v79
    %v391 = vunpack.c.l.b16 %v80
    %v392 = vunpack.c.h.b16 %v80
    %v393 = vunpack.c.l.b16 %v81
    %v394 = vunpack.c.h.b16 %v81
    %v395 = vunpack.c.l.b16 %v82
    %v396 = vunpack.c.h.b16 %v82
    %v397 = vunpack.c.l.b16 %v83
    %v398 = vunpack.c.h.b16 %v83
    %v399 = vunpack.c.l.b16 %v84
    %v400 = vunpack.c.h.b16 %v84
    %v401 = vunpack.c.l.b16 %v85
    %v402 = vunpack.c.h.b16 %v85
    %v403 = vunpack.c.l.b16 %v86
    %v404 = vunpack.c.h.b16 %v86
    %v405 = vunpack.c.l.b16 %v87
    %v406 = vunpack.c.h.b16 %v87
    %v407 = vunpack.c.l.b16 %v88
    %v408 = vunpack.c.h.b16 %v88
    %v409 = vunpack.c.l.b16 %v89
    %v410 = vunpack.c.h.b16 %v89
    %v411 = vunpack.c.l.b16 %v90
    %v412 = vunpack.c.h.b16 %v90
    %v413 = vunpack.c.l.b16 %v91
    %v414 = vunpack.c.h.b16 %v91
    %v415 = vunpack.c.l.b16 %v92
    %v416 = vunpack.c.h.b16 %v92
    %v417 = vunpack.c.l.b16 %v93
    %v418 = vunpack.c.h.b16 %v93
    %v419 = vunpack.c.l.b16 %v94
    %v420 = vunpack.c.h.b16 %v94
    %v421 = vunpack.c.l.b16 %v95
    %v422 = vunpack.c.h.b16 %v95
    %v423 = vunpack.c.l.b16 %v96
    %v424 = vunpack.c.h.b16 %v96
    %v425 = vunpack.c.l.b16 %v97
    %v426 = vunpack.c.h.b16 %v97
    %v427 = vunpack.c.l.b16 %v98
    %v428 = vunpack.c.h.b16 %v98
    %v429 = vunpack.c.l.b16 %v99
    %v430 = vunpack.c.h.b16 %v99
    %v431 = vunpack.c.l.b16 %v100
    %v432 = vunpack.c.h.b16 %v100
    %v433 = vunpack.c.l.b16 %v101
    %v434 = vunpack.c.h.b16 %v101
    %v435 = vunpack.c.l.b16 %v102
    %v436 = vunpack.c.h.b16 %v102
    %v437 = vunpack.c.l.b16 %v103
    %v438 = vunpack.c.h.b16 %v103
    %v439 = vunpack.c.l.b16 %v104
    %v440 = vunpack.c.h.b16 %v104
    %v441 = vunpack.c.l.b16 %v105
    %v442 = vunpack.c.h.b16 %v105
    %v443 = vunpack.c.l.b16 %v106
    %v444 = vunpack.c.h.b16 %v106
    %v445 = vunpack.c.l.b16 %v107
    %v446 = vunpack.c.h.b16 %v107
    %v447 = vunpack.c.l.b16 %v108
    %v448 = vunpack.c.h.b16 %v108
    %v449 = vunpack.c.l.b16 %v109
    %v450 = vunpack.c.h.b16 %v109
    %v451 = vunpack.c.l.b16 %v110
    %v452 = vunpack.c.h.b16 %v110
    %v453 = vunpack.c.l.b16 %v111
    %v454 = vunpack.c.h.b16 %v111
    %v455 = vunpack.c.l.b16 %v112
    %v456 = vunpack.c.h.b16 %v112
    %v457 = vunpack.c.l.b16 %v113
    %v458 = vunpack.c.h.b16 %v113
    %v459 = vunpack.c.l.b16 %v114
    %v460 = vunpack.c.h.b16 %v114
    %v461 = vunpack.c.l.b16 %v115
    %v462 = vunpack.c.h.b16 %v115
    %v463 = vunpack.c.l.b16 %v116
    %v464 = vunpack.c.h.b16 %v116
    %v465 = vunpack.c.l.b16 %v117
    %v466 = vunpack.c.h.b16 %v117
    %v467 = vunpack.c.l.b16 %v118
    %v468 = vunpack.c.h.b16 %v118
    %v469 = vunpack.c.l.b16 %v119
    %v470 = vunpack.c.h.b16 %v119
    %v471 = vunpack.c.l.b16 %v120
    %v472 = vunpack.c.h.b16 %v120
    %v473 = vunpack.c.l.b16 %v121
    %v474 = vunpack.c.h.b16 %v121
    %v475 = vunpack.c.l.b16 %v122
    %v476 = vunpack.c.h.b16 %v122
    %v477 = vpack.c.b16 %v287, %v285
    %v478 = vpack.c.b16 %v288, %v286
    %v479 = vpack.c.b16 %v291, %v289
    %v480 = vpack.c.b16 %v292, %v290
    %v481 = vpack.c.b16 %v295, %v293
    %v482 = vpack.c.b16 %v296, %v294
    %v483 = vpack.c.b16 %v299, %v297
    %v484 = vpack.c.b16 %v300, %v298
    %v485 = vpack.c.b16 %v303, %v301
    %v486 = vpack.c.b16 %v304, %v302
    %v487 = vpack.c.b16 %v307, %v305
    %v488 = vpack.c.b16 %v308, %v306
    %v489 = vpack.c.b16 %v311, %v309
    %v490 = vpack.c.b16 %v312, %v310
    %v491 = vpack.c.b16 %v315, %v313
    %v492 = vpack.c.b16 %v316, %v314
    %v493 = vpack.c.b16 %v319, %v317
    %v494 = vpack.c.b16 %v320, %v318
    %v495 = vpack.c.b16 %v323, %v321
    %v496 = vpack.c.b16 %v324, %v322
    %v497 = vpack.c.b16 %v327, %v325
    %v498 = vpack.c.b16 %v328, %v326
    %v499 = vpack.c.b16 %v331, %v329
    %v500 = vpack.c.b16 %v332, %v330
    %v501 = vpack.c.b16 %v335, %v333
    %v502 = vpack.c.b16 %v336, %v334
    %v503 = vpack.c.b16 %v339, %v337
    %v504 = vpack.c.b16 %v340, %v338
    %v505 = vpack.c.b16 %v343, %v341
    %v506 = vpack.c.b16 %v344, %v342
    %v507 = vpack.c.b16 %v347, %v345
    %v508 = vpack.c.b16 %v348, %v346
    %v509 = vpack.c.b16 %v351, %v349
    %v510 = vpack.c.b16 %v352, %v350
    %v511 = vpack.c.b16 %v355, %v353
    %v512 = vpack.c.b16 %v356, %v354
    %v513 = vpack.c.b16 %v359, %v357
    %v514 = vpack.c.b16 %v360, %v358
    %v515 = vpack.c.b16 %v363, %v361
    %v516 = vpack.c.b16 %v364, %v362
    %v517 = vpack.c.b16 %v367, %v365
    %v518 = vpack.c.b16 %v368, %v366
    %v519 = vpack.c.b16 %v371, %v369
    %v520 = vpack.c.b16 %v372, %v370
    %v521 = vpack.c.b16 %v375, %v373
    %v522 = vpack.c.b16 %v376, %v374
    %v523 = vpack.c.b16 %v379, %v377
    %v524 = vpack.c.b16 %v380, %v378
    %v525 = vpack.c.b16 %v383, %v381
    %v526 = vpack.c.b16 %v384, %v382
    %v527 = vpack.c.b16 %v387, %v385
    %v528 = vpack.c.b16 %v388, %v386
    %v529 = vpack.c.b16 %v391, %v389
    %v530 = vpack.c.b16 %v392, %v390
    %v531 = vpack.c.b16 %v395, %v393
    %v532 = vpack.c.b16 %v396, %v394
    %v533 = vpack.c.b16 %v399, %v397
    %v534 = vpack.c.b16 %v400, %v398
    %v535 = vpack.c.b16 %v403, %v401
    %v536 = vpack.c.b16 %v404, %v402
    %v537 = vpack.c.b16 %v407, %v405
    %v538 = vpack.c.b16 %v408, %v406
    %v539 = vpack.c.b16 %v411, %v409
    %v540 = vpack.c.b16 %v412, %v410
    %v541 = vpack.c.b16 %v415, %v413
    %v542 = vpack.c.b16 %v416, %v414
    %v543 = vpack.c.b16 %v419, %v417
    %v544 = vpack.c.b16 %v420, %v418
    %v545 = vpack.c.b16 %v423, %v421
    %v546 = vpack.c.b16 %v424, %v422
    %v547 = vpack.c.b16 %v427, %v425
    %v548 = vpack.c.b16 %v428, %v426
    %v549 = vpack.c.b16 %v431, %v429
    %v550 = vpack.c.b16 %v432, %v430
    %v551 = vpack.c.b16 %v435, %v433
    %v552 = vpack.c.b16 %v436, %v434
    %v553 = vpack.c.b16 %v439, %v437
    %v554 = vpack.c.b16 %v440, %v438
    %v555 = vpack.c.b16 %v443, %v441
    %v556 = vpack.c.b16 %v444, %v442
    %v557 = vpack.c.b16 %v447, %v445
    %v558 = vpack.c.b16 %v448, %v446
    %v559 = vpack.c.b16 %v451, %v449
    %v560 = vpack.c.b16 %v452, %v450
    %v561 = vpack.c.b16 %v455, %v453
    %v562 = vpack.c.b16 %v456, %v454
    %v563 = vpack.c.b16 %v459, %v457
    %v564 = vpack.c.b16 %v460, %v458
    %v565 = vpack.c.b16 %v463, %v461
    %v566 = vpack.c.b16 %v464, %v462
    %v567 = vpack.c.b16 %v467, %v465
    %v568 = vpack.c.b16 %v468, %v466
    %v569 = vpack.c.b16 %v471, %v469
    %v570 = vpack.c.b16 %v472, %v470
    %v571 = vpack.c.b16 %v475, %v473
    %v572 = vpack.c.b16 %v476, %v474
    %669 = vmatpush.bf16.msra.mxu0 %v491
    %670 = vmatpush.bf16.msra.mxu0 %v489
    %671 = vmatpush.bf16.msra.mxu0 %v487
    %672 = vmatpush.bf16.msra.mxu0 %v485
    %673 = vmatpush.bf16.msra.mxu0 %v483
    %674 = vmatpush.bf16.msra.mxu0 %v481
    %675 = vmatpush.bf16.msra.mxu0 %v479
    %676 = vmatpush.bf16.msra.mxu0 %v477
    %677 = vmatmul.bf16.gmra.mxu0 %v165
    %v678 = vpop.f32.mrf.mxu0
    %v679 = vadd.f32 %v125, %v678
    %v680 = vpop.f32.mrf.mxu0
    %v681 = vadd.f32 %v125, %v680
    %682 = vmatmul.bf16.gmra.mxu0 %v171
    %v683 = vpop.f32.mrf.mxu0
    %v684 = vadd.f32 %v125, %v683
    %v685 = vpop.f32.mrf.mxu0
    %v686 = vadd.f32 %v125, %v685
    %687 = vdwg.mxu0
    %688 = vmatpush.bf16.msra.mxu0 %v507
    %689 = vmatpush.bf16.msra.mxu0 %v505
    %690 = vmatpush.bf16.msra.mxu0 %v503
    %691 = vmatpush.bf16.msra.mxu0 %v501
    %692 = vmatpush.bf16.msra.mxu0 %v499
    %693 = vmatpush.bf16.msra.mxu0 %v497
    %694 = vmatpush.bf16.msra.mxu0 %v495
    %695 = vmatpush.bf16.msra.mxu0 %v493
    %696 = vmatmul.bf16.gmra.mxu0 %v166
    %v697 = vpop.f32.mrf.mxu0
    %v698 = vadd.f32 %v679, %v697
    %v699 = vpop.f32.mrf.mxu0
    %v700 = vadd.f32 %v681, %v699
    %701 = vmatmul.bf16.gmra.mxu0 %v172
    %v702 = vpop.f32.mrf.mxu0
    %v703 = vadd.f32 %v684, %v702
    %v704 = vpop.f32.mrf.mxu0
    %v705 = vadd.f32 %v686, %v704
    %706 = vdwg.mxu0
    %707 = vmatpush.bf16.msra.mxu0 %v523
    %708 = vmatpush.bf16.msra.mxu0 %v521
    %709 = vmatpush.bf16.msra.mxu0 %v519
    %710 = vmatpush.bf16.msra.mxu0 %v517
    %711 = vmatpush.bf16.msra.mxu0 %v515
    %712 = vmatpush.bf16.msra.mxu0 %v513
    %713 = vmatpush.bf16.msra.mxu0 %v511
    %714 = vmatpush.bf16.msra.mxu0 %v509
    %715 = vmatmul.bf16.gmra.mxu0 %v167
    %v716 = vpop.f32.mrf.mxu0
    %v717 = vadd.f32 %v698, %v716
    %v718 = vpop.f32.mrf.mxu0
    %v719 = vadd.f32 %v700, %v718
    %720 = vmatmul.bf16.gmra.mxu0 %v173
    %v721 = vpop.f32.mrf.mxu0
    %v722 = vadd.f32 %v703, %v721
    %v723 = vpop.f32.mrf.mxu0
    %v724 = vadd.f32 %v705, %v723
    %725 = vdwg.mxu0
    %726 = vmatpush.bf16.msra.mxu0 %v539
    %727 = vmatpush.bf16.msra.mxu0 %v537
    %728 = vmatpush.bf16.msra.mxu0 %v535
    %729 = vmatpush.bf16.msra.mxu0 %v533
    %730 = vmatpush.bf16.msra.mxu0 %v531
    %731 = vmatpush.bf16.msra.mxu0 %v529
    %732 = vmatpush.bf16.msra.mxu0 %v527
    %733 = vmatpush.bf16.msra.mxu0 %v525
    %734 = vmatmul.bf16.gmra.mxu0 %v168
    %v735 = vpop.f32.mrf.mxu0
    %v736 = vadd.f32 %v717, %v735
    %v737 = vpop.f32.mrf.mxu0
    %v738 = vadd.f32 %v719, %v737
    %739 = vmatmul.bf16.gmra.mxu0 %v174
    %v740 = vpop.f32.mrf.mxu0
    %v741 = vadd.f32 %v722, %v740
    %v742 = vpop.f32.mrf.mxu0
    %v743 = vadd.f32 %v724, %v742
    %744 = vdwg.mxu0
    %745 = vmatpush.bf16.msra.mxu0 %v555
    %746 = vmatpush.bf16.msra.mxu0 %v553
    %747 = vmatpush.bf16.msra.mxu0 %v551
    %748 = vmatpush.bf16.msra.mxu0 %v549
    %749 = vmatpush.bf16.msra.mxu0 %v547
    %750 = vmatpush.bf16.msra.mxu0 %v545
    %751 = vmatpush.bf16.msra.mxu0 %v543
    %752 = vmatpush.bf16.msra.mxu0 %v541
    %753 = vmatmul.bf16.gmra.mxu0 %v169
    %v754 = vpop.f32.mrf.mxu0
    %v755 = vadd.f32 %v736, %v754
    %v756 = vpop.f32.mrf.mxu0
    %v757 = vadd.f32 %v738, %v756
    %758 = vmatmul.bf16.gmra.mxu0 %v175
    %v759 = vpop.f32.mrf.mxu0
    %v760 = vadd.f32 %v741, %v759
    %v761 = vpop.f32.mrf.mxu0
    %v762 = vadd.f32 %v743, %v761
    %763 = vdwg.mxu0
    %764 = vmatpush.bf16.msra.mxu0 %v571
    %765 = vmatpush.bf16.msra.mxu0 %v569
    %766 = vmatpush.bf16.msra.mxu0 %v567
    %767 = vmatpush.bf16.msra.mxu0 %v565
    %768 = vmatpush.bf16.msra.mxu0 %v563
    %769 = vmatpush.bf16.msra.mxu0 %v561
    %770 = vmatpush.bf16.msra.mxu0 %v559
    %771 = vmatpush.bf16.msra.mxu0 %v557
    %772 = vmatmul.bf16.gmra.mxu0 %v170
    %v773 = vpop.f32.mrf.mxu0
    %v774 = vadd.f32 %v755, %v773
    %v775 = vpop.f32.mrf.mxu0
    %v776 = vadd.f32 %v757, %v775
    %777 = vmatmul.bf16.gmra.mxu0 %v176
    %v778 = vpop.f32.mrf.mxu0
    %v779 = vadd.f32 %v760, %v778
    %v780 = vpop.f32.mrf.mxu0
    %v781 = vadd.f32 %v762, %v780
    %782 = vdwg.mxu0
    %783 = vmatpush.bf16.msra.mxu0 %v492
    %784 = vmatpush.bf16.msra.mxu0 %v490
    %785 = vmatpush.bf16.msra.mxu0 %v488
    %786 = vmatpush.bf16.msra.mxu0 %v486
    %787 = vmatpush.bf16.msra.mxu0 %v484
    %788 = vmatpush.bf16.msra.mxu0 %v482
    %789 = vmatpush.bf16.msra.mxu0 %v480
    %790 = vmatpush.bf16.msra.mxu0 %v478
    %791 = vmatmul.bf16.gmra.mxu0 %v165
    %v792 = vpop.f32.mrf.mxu0
    %v793 = vadd.f32 %v126, %v792
    %v794 = vpop.f32.mrf.mxu0
    %v795 = vadd.f32 %v126, %v794
    %796 = vmatmul.bf16.gmra.mxu0 %v171
    %v797 = vpop.f32.mrf.mxu0
    %v798 = vadd.f32 %v126, %v797
    %v799 = vpop.f32.mrf.mxu0
    %v800 = vadd.f32 %v126, %v799
    %801 = vdwg.mxu0
    %802 = vmatpush.bf16.msra.mxu0 %v508
    %803 = vmatpush.bf16.msra.mxu0 %v506
    %804 = vmatpush.bf16.msra.mxu0 %v504
    %805 = vmatpush.bf16.msra.mxu0 %v502
    %806 = vmatpush.bf16.msra.mxu0 %v500
    %807 = vmatpush.bf16.msra.mxu0 %v498
    %808 = vmatpush.bf16.msra.mxu0 %v496
    %809 = vmatpush.bf16.msra.mxu0 %v494
    %810 = vmatmul.bf16.gmra.mxu0 %v166
    %v811 = vpop.f32.mrf.mxu0
    %v812 = vadd.f32 %v793, %v811
    %v813 = vpop.f32.mrf.mxu0
    %v814 = vadd.f32 %v795, %v813
    %815 = vmatmul.bf16.gmra.mxu0 %v172
    %v816 = vpop.f32.mrf.mxu0
    %v817 = vadd.f32 %v798, %v816
    %v818 = vpop.f32.mrf.mxu0
    %v819 = vadd.f32 %v800, %v818
    %820 = vdwg.mxu0
    %821 = vmatpush.bf16.msra.mxu0 %v524
    %822 = vmatpush.bf16.msra.mxu0 %v522
    %823 = vmatpush.bf16.msra.mxu0 %v520
    %824 = vmatpush.bf16.msra.mxu0 %v518
    %825 = vmatpush.bf16.msra.mxu0 %v516
    %826 = vmatpush.bf16.msra.mxu0 %v514
    %827 = vmatpush.bf16.msra.mxu0 %v512
    %828 = vmatpush.bf16.msra.mxu0 %v510
    %829 = vmatmul.bf16.gmra.mxu0 %v167
    %v830 = vpop.f32.mrf.mxu0
    %v831 = vadd.f32 %v812, %v830
    %v832 = vpop.f32.mrf.mxu0
    %v833 = vadd.f32 %v814, %v832
    %834 = vmatmul.bf16.gmra.mxu0 %v173
    %v835 = vpop.f32.mrf.mxu0
    %v836 = vadd.f32 %v817, %v835
    %v837 = vpop.f32.mrf.mxu0
    %v838 = vadd.f32 %v819, %v837
    %839 = vdwg.mxu0
    %840 = vmatpush.bf16.msra.mxu0 %v540
    %841 = vmatpush.bf16.msra.mxu0 %v538
    %842 = vmatpush.bf16.msra.mxu0 %v536
    %843 = vmatpush.bf16.msra.mxu0 %v534
    %844 = vmatpush.bf16.msra.mxu0 %v532
    %845 = vmatpush.bf16.msra.mxu0 %v530
    %846 = vmatpush.bf16.msra.mxu0 %v528
    %847 = vmatpush.bf16.msra.mxu0 %v526
    %848 = vmatmul.bf16.gmra.mxu0 %v168
    %v849 = vpop.f32.mrf.mxu0
    %v850 = vadd.f32 %v831, %v849
    %v851 = vpop.f32.mrf.mxu0
    %v852 = vadd.f32 %v833, %v851
    %853 = vmatmul.bf16.gmra.mxu0 %v174
    %v854 = vpop.f32.mrf.mxu0
    %v855 = vadd.f32 %v836, %v854
    %v856 = vpop.f32.mrf.mxu0
    %v857 = vadd.f32 %v838, %v856
    %858 = vdwg.mxu0
    %859 = vmatpush.bf16.msra.mxu0 %v556
    %860 = vmatpush.bf16.msra.mxu0 %v554
    %861 = vmatpush.bf16.msra.mxu0 %v552
    %862 = vmatpush.bf16.msra.mxu0 %v550
    %863 = vmatpush.bf16.msra.mxu0 %v548
    %864 = vmatpush.bf16.msra.mxu0 %v546
    %865 = vmatpush.bf16.msra.mxu0 %v544
    %866 = vmatpush.bf16.msra.mxu0 %v542
    %867 = vmatmul.bf16.gmra.mxu0 %v169
    %v868 = vpop.f32.mrf.mxu0
    %v869 = vadd.f32 %v850, %v868
    %v870 = vpop.f32.mrf.mxu0
    %v871 = vadd.f32 %v852, %v870
    %872 = vmatmul.bf16.gmra.mxu0 %v175
    %v873 = vpop.f32.mrf.mxu0
    %v874 = vadd.f32 %v855, %v873
    %v875 = vpop.f32.mrf.mxu0
    %v876 = vadd.f32 %v857, %v875
    %877 = vdwg.mxu0
    %878 = vmatpush.bf16.msra.mxu0 %v572
    %879 = vmatpush.bf16.msra.mxu0 %v570
    %880 = vmatpush.bf16.msra.mxu0 %v568
    %881 = vmatpush.bf16.msra.mxu0 %v566
    %882 = vmatpush.bf16.msra.mxu0 %v564
    %883 = vmatpush.bf16.msra.mxu0 %v562
    %884 = vmatpush.bf16.msra.mxu0 %v560
    %885 = vmatpush.bf16.msra.mxu0 %v558
    %886 = vmatmul.bf16.gmra.mxu0 %v170
    %v887 = vpop.f32.mrf.mxu0
    %v888 = vadd.f32 %v869, %v887
    %v889 = vpop.f32.mrf.mxu0
    %v890 = vadd.f32 %v871, %v889
    %891 = vmatmul.bf16.gmra.mxu0 %v176
    %v892 = vpop.f32.mrf.mxu0
    %v893 = vadd.f32 %v874, %v892
    %v894 = vpop.f32.mrf.mxu0
    %v895 = vadd.f32 %v876, %v894
    %896 = vdwg.mxu0
    %897 = vst [vmem:[#allocation2] sm:$0xff] %v774
    %898 = vst [vmem:[#allocation2 + $0x8] sm:$0xff] %v888
    %899 = vst [vmem:[#allocation2 + $0x10] sm:$0xff] %v776
    %900 = vst [vmem:[#allocation2 + $0x18] sm:$0xff] %v890
    %901 = vst [vmem:[#allocation2 + $0x20] sm:$0xff] %v779
    %902 = vst [vmem:[#allocation2 + $0x28] sm:$0xff] %v893
    %903 = vst [vmem:[#allocation2 + $0x30] sm:$0xff] %v781
    %904 = vst [vmem:[#allocation2 + $0x38] sm:$0xff] %v895
    // Predicated region
    $region14: #{patch_embed_forward.1} parent=1 // pred_check
      _
    $region15: #{patch_embed_forward.1} parent=1 // pred_check_branch
      %906 = sbr.rel (0) target = $region17
    $region16: #{patch_embed_forward.1} parent=1 // pred_region
      %908 = vsyncadd [#allocation3], 0
      %s909 = sshll.u32 [#allocation2], 4
      %s910 = int_to_ptr.vmem [resolvable:$true] %s909
      %s911 = sshll.u32 %s3, 4
      %s912 = int_to_ptr.hbm [resolvable:$true] %s911
      %917 = dma.vmem_to_hbm [thread:$0]  %s910, 1024, %s912, [#allocation3], 256, 256, 16
    $region17: #{patch_embed_forward.1} parent=1 // pred_fallthru
      _
    // Predicated region
    $region18: #{patch_embed_forward.1} parent=1 // pred_check
      _
    $region19: #{patch_embed_forward.1} parent=1 // pred_check_branch
      %919 = sbr.rel (0) target = $region21
    $region20: #{patch_embed_forward.1} parent=1 // pred_region
      %921 = dma.done [#allocation3], 1024
    $region21: #{patch_embed_forward.1} parent=1 // pred_fallthru
      _
    %922 = vsyncpa [#allocation3], 1

</llo_original>
